<compile_context>
chip_gen: v7x
topology: tpu7x:2x2x1
jax: 0.10.0
libtpu: 0.0.40
codegen_flags: <defaults>
</compile_context>

<pallas_src>
import jax
import jax.numpy as jnp
from jax.experimental import pallas as pl
from jax.experimental.pallas import tpu as pltpu

LANE = 128
_BATCH_ALIGN = 16  # bf16 sublane packing granularity (also valid for f32)


def _round_up(x, m):
    return ((x + m - 1) // m) * m


def _cdiv(a, b):
    return (a + b - 1) // b


# ---------------------------------------------------------------------------
# Kernel: fused Linear->sigmoid->Linear->sigmoid->Linear->softmax on one
# batch tile.  Hidden/output feature dims are lane-padded to 128; the padded
# logit lanes are killed by the -1e30 baked into b3.
# ---------------------------------------------------------------------------
def _mlp_softmax_kernel(x_ref, w1_ref, w2_ref, w3_ref, b1_ref, b2_ref, b3_ref,
                        o_ref):
    # Layer 1: bf16 MXU matmul, f32 accumulate; f32 bias + sigmoid (EUP).
    h1 = jnp.dot(x_ref[...], w1_ref[...], preferred_element_type=jnp.float32)
    h1 = jax.nn.sigmoid(h1 + b1_ref[...])

    # Layer 2: cast activations to bf16 only at the MXU input.
    h2 = jnp.dot(h1.astype(jnp.bfloat16), w2_ref[...],
                 preferred_element_type=jnp.float32)
    h2 = jax.nn.sigmoid(h2 + b2_ref[...])

    # Layer 3 + softmax over the (padded) lane axis.  Padded hidden lanes
    # (sigmoid(0)=0.5) hit zero weight rows -> contribute 0; padded logit
    # lanes get -1e30 directly from b3 -> exp() underflows to 0.
    logits = jnp.dot(h2.astype(jnp.bfloat16), w3_ref[...],
                     preferred_element_type=jnp.float32)
    logits = logits + b3_ref[...]

    m = jnp.max(logits, axis=1, keepdims=True)
    e = jnp.exp(logits - m)
    denom = jnp.sum(e, axis=1, keepdims=True)
    # (tb,1) divide then full-tile multiply; pl.reciprocal(approx=True)+Newton
    # would push this onto the EUP, but the divide is negligible here.
    o_ref[...] = (e * (1.0 / denom)).astype(o_ref.dtype)


# ---------------------------------------------------------------------------
# One-time parameter preparation (hoisted out of the per-call path).
# ---------------------------------------------------------------------------
def prepare_params(params):
    """Pad/cast weights & biases once.

    params: dict of (w_t, b) per layer, with w_t shaped [in, out] (already
    transposed relative to nn.Linear.weight) and b shaped [1, out], f32.
    Returns padded bf16 weights, padded f32 biases (b3's padded lanes carry
    -1e30 so the kernel needs no explicit softmax mask) and the true sizes.
    """
    w1_t, b1 = params["map1"]
    w2_t, b2 = params["map2"]
    w3_t, b3 = params["map3"]

    input_size, hidden_size = w1_t.shape
    output_size = w3_t.shape[1]
    hid_pad = _round_up(hidden_size, LANE)
    out_pad = _round_up(output_size, LANE)

    bf16 = jnp.bfloat16
    f32 = jnp.float32

    # Note: w1's K (input) dim is intentionally NOT padded -- x keeps its full
    # feature dim and the block equals the full array dims.
    w1_p = jnp.pad(w1_t, ((0, 0), (0, hid_pad - hidden_size))).astype(bf16)
    w2_p = jnp.pad(w2_t, ((0, hid_pad - hidden_size),
                          (0, hid_pad - hidden_size))).astype(bf16)
    w3_p = jnp.pad(w3_t, ((0, hid_pad - hidden_size),
                          (0, out_pad - output_size))).astype(bf16)

    b1_p = jnp.pad(b1.astype(f32), ((0, 0), (0, hid_pad - hidden_size)))
    b2_p = jnp.pad(b2.astype(f32), ((0, 0), (0, hid_pad - hidden_size)))
    # Fold the padded-lane softmax mask into b3: padded lanes become -1e30.
    b3_p = jnp.pad(b3.astype(f32), ((0, 0), (0, out_pad - output_size)),
                   constant_values=-1e30)

    return {
        "w1": w1_p, "w2": w2_p, "w3": w3_p,
        "b1": b1_p, "b2": b2_p, "b3": b3_p,
        "sizes": (int(input_size), int(hidden_size), int(output_size)),
    }


def _choose_batch_tiling(batch, batch_tile):
    """Pick (tile_rows, padded_batch) with minimal padding waste and, when the
    batch is large enough to keep >=256-row tiles, at least 2 grid steps."""
    batch_a = _round_up(batch, _BATCH_ALIGN)
    tb = min(_round_up(batch_tile, _BATCH_ALIGN), batch_a)
    n = _cdiv(batch_a, tb)
    if n < 2 and batch_a >= 2 * 256:
        n = 2  # give v7x's second TensorCore work / enable DMA-compute overlap
    tb = _round_up(_cdiv(batch_a, n), _BATCH_ALIGN)
    n = _cdiv(batch_a, tb)
    return tb, n * tb


# ---------------------------------------------------------------------------
# Forward wrapper
# ---------------------------------------------------------------------------
def malware_classifier_forward(x, prepared, *, batch_tile=512):
    """x: [batch, input_size]. prepared: output of prepare_params()."""
    input_size, hidden_size, output_size = prepared["sizes"]
    w1, w2, w3 = prepared["w1"], prepared["w2"], prepared["w3"]
    b1, b2, b3 = prepared["b1"], prepared["b2"], prepared["b3"]

    batch = x.shape[0]
    assert x.shape[1] == input_size
    hid_pad = w1.shape[1]
    out_pad = w3.shape[1]

    tb, batch_pad = _choose_batch_tiling(batch, batch_tile)
    n_tiles = batch_pad // tb

    # Only pad the batch (small, at most one tile of waste); feature dim of x
    # stays unpadded.  Cast to bf16 so the streamed x tile is half-size and
    # every matmul runs as a native bf16 MXU pass with f32 accumulation.
    x_p = x
    if batch_pad != batch:
        x_p = jnp.pad(x_p, ((0, batch_pad - batch), (0, 0)))
    x_p = x_p.astype(jnp.bfloat16)

    # --- VMEM budget (headroom under v7x's 64 MiB physical VMEM) ------------
    vmem_need = (
        2 * tb * input_size * 2                       # x tile, bf16, 2 buffers
        + 2 * tb * out_pad * 4                        # out tile, f32, 2 buffers
        + 2 * (w1.size + w2.size + w3.size) * 2       # resident bf16 weights
        + 3 * 8 * max(hid_pad, out_pad) * 4           # biases (tile-rounded)
    )
    vmem_limit = int(min(56 * 2**20, max(4 * vmem_need, 32 * 2**20)))
    # For extremely wide inputs (input_size*hid_pad*2 bytes approaching half of
    # VMEM, i.e. ~100k+ features) w1 should be K-tiled over an extra
    # "arbitrary" grid axis with a VMEM accumulator instead of kept resident.

    # --- advisory cost estimate (unpadded math) ------------------------------
    flops = 2 * batch * (input_size * hidden_size
                         + hidden_size * hidden_size
                         + hidden_size * output_size)
    transcendentals = batch * (2 * hidden_size + output_size)
    bytes_accessed = (x_p.size * 2
                      + (w1.size + w2.size + w3.size) * 2
                      + (b1.size + b2.size + b3.size) * 4
                      + batch_pad * out_pad * 4)
    cost = pl.CostEstimate(flops=flops,
                           transcendentals=transcendentals,
                           bytes_accessed=bytes_accessed)

    out_padded = pl.pallas_call(
        _mlp_softmax_kernel,
        out_shape=jax.ShapeDtypeStruct((batch_pad, out_pad), jnp.float32),
        grid=(n_tiles,),
        in_specs=[
            # x: streamed over the batch; last dim equals the full array dim.
            pl.BlockSpec((tb, input_size), lambda i: (i, 0)),
            # weights: resident across all grid steps.
            pl.BlockSpec((input_size, hid_pad), lambda i: (0, 0)),
            pl.BlockSpec((hid_pad, hid_pad), lambda i: (0, 0)),
            pl.BlockSpec((hid_pad, out_pad), lambda i: (0, 0)),
            # biases: three separate lane-aligned refs.
            pl.BlockSpec((1, hid_pad), lambda i: (0, 0)),
            pl.BlockSpec((1, hid_pad), lambda i: (0, 0)),
            pl.BlockSpec((1, out_pad), lambda i: (0, 0)),
        ],
        out_specs=pl.BlockSpec((tb, out_pad), lambda i: (i, 0)),
        compiler_params=pltpu.CompilerParams(
            dimension_semantics=("parallel",),  # batch tiles across v7x TCs
            vmem_limit_bytes=vmem_limit,
        ),
        cost_estimate=cost,
    )(x_p, w1, w2, w3, b1, b2, b3)

    return out_padded[:batch, :output_size]


# ---------------------------------------------------------------------------
# Parameter init + references
# ---------------------------------------------------------------------------
def init_params(key, input_size, hidden_size, output_size):
    """nn.Linear-style U(-1/sqrt(fan_in), 1/sqrt(fan_in)) init.
    Stored already transposed: W_t has shape [in, out]; bias shape [1, out]."""
    def linear(k, fan_in, fan_out):
        kw, kb = jax.random.split(k)
        bound = 1.0 / jnp.sqrt(fan_in)
        w_t = jax.random.uniform(kw, (fan_in, fan_out), jnp.float32, -bound, bound)
        b = jax.random.uniform(kb, (1, fan_out), jnp.float32, -bound, bound)
        return w_t, b

    k1, k2, k3 = jax.random.split(key, 3)
    return {
        "map1": linear(k1, input_size, hidden_size),
        "map2": linear(k2, hidden_size, hidden_size),
        "map3": linear(k3, hidden_size, output_size),
    }


def _reference_forward_f32(x, params):
    """Pure-f32 JAX reference of the PyTorch forward."""
    w1_t, b1 = params["map1"]
    w2_t, b2 = params["map2"]
    w3_t, b3 = params["map3"]
    h1 = jax.nn.sigmoid(x @ w1_t + b1)
    h2 = jax.nn.sigmoid(h1 @ w2_t + b2)
    return jax.nn.softmax(h2 @ w3_t + b3, axis=1)


def _reference_forward_bf16(x, params):
    """Reference with the same bf16-operand / f32-accumulate matmuls as the kernel."""
    bf16 = jnp.bfloat16
    w1_t, b1 = params["map1"]
    w2_t, b2 = params["map2"]
    w3_t, b3 = params["map3"]
    h1 = jax.nn.sigmoid(
        jnp.dot(x.astype(bf16), w1_t.astype(bf16),
                preferred_element_type=jnp.float32) + b1)
    h2 = jax.nn.sigmoid(
        jnp.dot(h1.astype(bf16), w2_t.astype(bf16),
                preferred_element_type=jnp.float32) + b2)
    logits = jnp.dot(h2.astype(bf16), w3_t.astype(bf16),
                     preferred_element_type=jnp.float32) + b3
    return jax.nn.softmax(logits, axis=1)


if __name__ == "__main__":
    # Small shapes consistent with the module: batch=8, input=32, hidden=32, output=16
    batch, input_size, hidden_size, output_size = 8, 32, 32, 16

    key = jax.random.PRNGKey(0)
    kx, kp = jax.random.split(key)
    x = jax.random.normal(kx, (batch, input_size), jnp.float32)
    params = init_params(kp, input_size, hidden_size, output_size)
    prepared = prepare_params(params)   # one-time padding/cast

    out = malware_classifier_forward(x, prepared)
    out = jax.block_until_ready(out)

    assert out.shape == (batch, output_size)
    # rows of a softmax sum to 1
    assert jnp.allclose(jnp.sum(out, axis=1), 1.0, atol=1e-3)
    # matches a reference with identical bf16-operand matmuls
    ref_bf16 = _reference_forward_bf16(x, params)
    assert jnp.allclose(out, ref_bf16, atol=1e-3, rtol=1e-3)
    # semantically close to the full-f32 PyTorch-equivalent forward
    ref_f32 = _reference_forward_f32(x, params)
    assert jnp.allclose(out, ref_f32, atol=2e-2, rtol=2e-2)

    print("KERNEL_OK")
</pallas_src>

<mosaic_0001>
module attributes {stable_mosaic.version = 11 : i64} {
  func.func @_mlp_softmax_kernel(%arg0: i32, %arg1: memref<16x32xbf16, #tpu.memory_space<vmem>>, %arg2: memref<32x128xbf16, #tpu.memory_space<vmem>>, %arg3: memref<128x128xbf16, #tpu.memory_space<vmem>>, %arg4: memref<128x128xbf16, #tpu.memory_space<vmem>>, %arg5: memref<1x128xf32, #tpu.memory_space<vmem>>, %arg6: memref<1x128xf32, #tpu.memory_space<vmem>>, %arg7: memref<1x128xf32, #tpu.memory_space<vmem>>, %arg8: memref<16x128xf32, #tpu.memory_space<vmem>>) attributes {dimension_semantics = [#tpu.dimension_semantics<parallel>], iteration_bounds = array<i64: 1>, scalar_prefetch = 0 : i64, scratch_operands = 0 : i64, tpu.core_type = #tpu.core_type<tc>, window_params = [{transform_indices = @transform_0, window_bounds = array<i64: 16, 32>}, {pipeline_mode = #tpu.pipeline_mode<synchronous>, transform_indices = @transform_1, window_bounds = array<i64: 32, 128>}, {pipeline_mode = #tpu.pipeline_mode<synchronous>, transform_indices = @transform_2, window_bounds = array<i64: 128, 128>}, {pipeline_mode = #tpu.pipeline_mode<synchronous>, transform_indices = @transform_3, window_bounds = array<i64: 128, 128>}, {pipeline_mode = #tpu.pipeline_mode<synchronous>, transform_indices = @transform_4, window_bounds = array<i64: 1, 128>}, {pipeline_mode = #tpu.pipeline_mode<synchronous>, transform_indices = @transform_5, window_bounds = array<i64: 1, 128>}, {pipeline_mode = #tpu.pipeline_mode<synchronous>, transform_indices = @transform_6, window_bounds = array<i64: 1, 128>}, {transform_indices = @transform_7, window_bounds = array<i64: 16, 128>}]} {
    %c0 = arith.constant 0 : index
    %c0_0 = arith.constant 0 : index
    %0 = vector.load %arg1[%c0, %c0_0] : memref<16x32xbf16, #tpu.memory_space<vmem>>, vector<16x32xbf16>
    %c0_1 = arith.constant 0 : index
    %c0_2 = arith.constant 0 : index
    %1 = vector.load %arg2[%c0_1, %c0_2] : memref<32x128xbf16, #tpu.memory_space<vmem>>, vector<32x128xbf16>
    %cst = arith.constant dense<0.000000e+00> : vector<16x128xf32>
    %2 = tpu.matmul %0, %1, %cst {dimension_numbers = #tpu.dot_dimension_numbers<[1], [0], [0], [1], [0, 0, 1, 1], [], []>} : vector<16x32xbf16>, vector<32x128xbf16>, vector<16x128xf32> -> vector<16x128xf32>
    %c0_3 = arith.constant 0 : index
    %c0_4 = arith.constant 0 : index
    %3 = vector.load %arg5[%c0_3, %c0_4] : memref<1x128xf32, #tpu.memory_space<vmem>>, vector<1x128xf32>
    %4 = vector.broadcast %3 : vector<1x128xf32> to vector<16x128xf32>
    %5 = arith.addf %2, %4 : vector<16x128xf32>
    %6 = arith.negf %5 : vector<16x128xf32>
    %7 = math.exp %6 : vector<16x128xf32>
    %cst_5 = arith.constant 1.000000e+00 : f32
    %8 = vector.broadcast %cst_5 : f32 to vector<16x128xf32>
    %9 = arith.addf %8, %7 : vector<16x128xf32>
    %10 = arith.divf %8, %9 : vector<16x128xf32>
    %11 = arith.truncf %10 : vector<16x128xf32> to vector<16x128xbf16>
    %c0_6 = arith.constant 0 : index
    %c0_7 = arith.constant 0 : index
    %12 = vector.load %arg3[%c0_6, %c0_7] : memref<128x128xbf16, #tpu.memory_space<vmem>>, vector<128x128xbf16>
    %cst_8 = arith.constant dense<0.000000e+00> : vector<16x128xf32>
    %13 = tpu.matmul %11, %12, %cst_8 {dimension_numbers = #tpu.dot_dimension_numbers<[1], [0], [0], [1], [0, 0, 1, 1], [], []>} : vector<16x128xbf16>, vector<128x128xbf16>, vector<16x128xf32> -> vector<16x128xf32>
    %c0_9 = arith.constant 0 : index
    %c0_10 = arith.constant 0 : index
    %14 = vector.load %arg6[%c0_9, %c0_10] : memref<1x128xf32, #tpu.memory_space<vmem>>, vector<1x128xf32>
    %15 = vector.broadcast %14 : vector<1x128xf32> to vector<16x128xf32>
    %16 = arith.addf %13, %15 : vector<16x128xf32>
    %17 = arith.negf %16 : vector<16x128xf32>
    %18 = math.exp %17 : vector<16x128xf32>
    %cst_11 = arith.constant 1.000000e+00 : f32
    %19 = vector.broadcast %cst_11 : f32 to vector<16x128xf32>
    %20 = arith.addf %19, %18 : vector<16x128xf32>
    %21 = arith.divf %19, %20 : vector<16x128xf32>
    %22 = arith.truncf %21 : vector<16x128xf32> to vector<16x128xbf16>
    %c0_12 = arith.constant 0 : index
    %c0_13 = arith.constant 0 : index
    %23 = vector.load %arg4[%c0_12, %c0_13] : memref<128x128xbf16, #tpu.memory_space<vmem>>, vector<128x128xbf16>
    %cst_14 = arith.constant dense<0.000000e+00> : vector<16x128xf32>
    %24 = tpu.matmul %22, %23, %cst_14 {dimension_numbers = #tpu.dot_dimension_numbers<[1], [0], [0], [1], [0, 0, 1, 1], [], []>} : vector<16x128xbf16>, vector<128x128xbf16>, vector<16x128xf32> -> vector<16x128xf32>
    %c0_15 = arith.constant 0 : index
    %c0_16 = arith.constant 0 : index
    %25 = vector.load %arg7[%c0_15, %c0_16] : memref<1x128xf32, #tpu.memory_space<vmem>>, vector<1x128xf32>
    %26 = vector.broadcast %25 : vector<1x128xf32> to vector<16x128xf32>
    %27 = arith.addf %24, %26 : vector<16x128xf32>
    %cst_17 = arith.constant dense<0xFF800000> : vector<16xf32>
    %28 = vector.multi_reduction <maximumf>, %27, %cst_17 [1] : vector<16x128xf32> to vector<16xf32>
    %29 = vector.shape_cast %28 : vector<16xf32> to vector<16x1xf32>
    %30 = vector.broadcast %29 : vector<16x1xf32> to vector<16x128xf32>
    %31 = arith.subf %27, %30 : vector<16x128xf32>
    %32 = math.exp %31 : vector<16x128xf32>
    %cst_18 = arith.constant dense<0.000000e+00> : vector<16xf32>
    %33 = vector.multi_reduction <add>, %32, %cst_18 [1] : vector<16x128xf32> to vector<16xf32>
    %34 = vector.shape_cast %33 : vector<16xf32> to vector<16x1xf32>
    %cst_19 = arith.constant 1.000000e+00 : f32
    %35 = vector.broadcast %cst_19 : f32 to vector<16x1xf32>
    %36 = arith.divf %35, %34 : vector<16x1xf32>
    %37 = vector.broadcast %36 : vector<16x1xf32> to vector<16x128xf32>
    %38 = arith.mulf %32, %37 : vector<16x128xf32>
    %c0_20 = arith.constant 0 : index
    %c0_21 = arith.constant 0 : index
    %39 = vector.load %arg8[%c0_20, %c0_21] : memref<16x128xf32, #tpu.memory_space<vmem>>, vector<16x128xf32>
    tpu.vector_store %arg8[%c0_20, %c0_21], %38 {strides = array<i32>} : memref<16x128xf32, #tpu.memory_space<vmem>>, vector<16x128xf32>,
    return
  }
  func.func @transform_0(%arg0: i32) -> (i32, i32) {
    %c0_i32 = arith.constant 0 : i32
    %c0_i32_0 = arith.constant 0 : i32
    return %arg0, %c0_i32 : i32, i32
  }
  func.func @transform_1(%arg0: i32) -> (i32, i32) {
    %c0_i32 = arith.constant 0 : i32
    %c0_i32_0 = arith.constant 0 : i32
    %c0_i32_1 = arith.constant 0 : i32
    return %c0_i32, %c0_i32_0 : i32, i32
  }
  func.func @transform_2(%arg0: i32) -> (i32, i32) {
    %c0_i32 = arith.constant 0 : i32
    %c0_i32_0 = arith.constant 0 : i32
    %c0_i32_1 = arith.constant 0 : i32
    return %c0_i32, %c0_i32_0 : i32, i32
  }
  func.func @transform_3(%arg0: i32) -> (i32, i32) {
    %c0_i32 = arith.constant 0 : i32
    %c0_i32_0 = arith.constant 0 : i32
    %c0_i32_1 = arith.constant 0 : i32
    return %c0_i32, %c0_i32_0 : i32, i32
  }
  func.func @transform_4(%arg0: i32) -> (i32, i32) {
    %c0_i32 = arith.constant 0 : i32
    %c0_i32_0 = arith.constant 0 : i32
    %c0_i32_1 = arith.constant 0 : i32
    return %c0_i32, %c0_i32_0 : i32, i32
  }
  func.func @transform_5(%arg0: i32) -> (i32, i32) {
    %c0_i32 = arith.constant 0 : i32
    %c0_i32_0 = arith.constant 0 : i32
    %c0_i32_1 = arith.constant 0 : i32
    return %c0_i32, %c0_i32_0 : i32, i32
  }
  func.func @transform_6(%arg0: i32) -> (i32, i32) {
    %c0_i32 = arith.constant 0 : i32
    %c0_i32_0 = arith.constant 0 : i32
    %c0_i32_1 = arith.constant 0 : i32
    return %c0_i32, %c0_i32_0 : i32, i32
  }
  func.func @transform_7(%arg0: i32) -> (i32, i32) {
    %c0_i32 = arith.constant 0 : i32
    %c0_i32_0 = arith.constant 0 : i32
    return %arg0, %c0_i32 : i32, i32
  }
}

</mosaic_0001>

<llo_original>
// kernel: tpu_custom_call.1
$region0: #{tpu_custom_call.1}
  #allocation0 [shape = 'u32[]', space=smem, size = 0x4, offset = 0x4, fixed_abs, tag = 'smem constant byte address 0x4 - core index']
  #allocation1 [shape = 'u32[144,128]{1,0:T(1,128)}', space=vmem, size = 0x12000, scoped, tag = 'internal scratch']
  %s0 = inlined_call_operand.hbm [shape: bf16[16,32], index: 0, kind: input, shape index: {}]
  %s1 = inlined_call_operand.hbm [shape: bf16[32,128], index: 1, kind: input, shape index: {}]
  %s2 = inlined_call_operand.hbm [shape: bf16[128,128], index: 2, kind: input, shape index: {}]
  %s3 = inlined_call_operand.hbm [shape: bf16[128,128], index: 3, kind: input, shape index: {}]
  %s4 = inlined_call_operand.vmem [shape: f32[1,128], index: 4, kind: input, shape index: {}]
  %s5 = inlined_call_operand.vmem [shape: f32[1,128], index: 5, kind: input, shape index: {}]
  %s6 = inlined_call_operand.vmem [shape: f32[1,128], index: 6, kind: input, shape index: {}]
  %s7 = inlined_call_operand.hbm [shape: f32[16,128], index: 7, kind: output, shape index: {}]
  %s8 = sld [smem:[#allocation0]]
  $region54: #{tpu_custom_call.1} parent=0
    _
  %s10 = ssub.s32 1, %s8
  %s11 = scalar_select 0, %s10, %s8
  $region1: #{tpu_custom_call.1} parent=0
    #allocation2 [shape = 'u8[4096]{0}', space=vmem, size = 0x1000, scoped, tag = 'input window, operand 0, single buffered']
    #allocation3 [shape = 's32[1]{0}', space=sflag, size = 0x4, scoped, tag = 'scoped memory for tpu_custom_call.1']
    #allocation4 [shape = 's32[1]{0}', space=sflag, size = 0x4, scoped, tag = 'scoped memory for tpu_custom_call.1']
    #allocation5 [shape = 'u8[8192]{0}', space=vmem, size = 0x2000, scoped, tag = 'input window, operand 1, single buffered']
    #allocation6 [shape = 's32[1]{0}', space=sflag, size = 0x4, scoped, tag = 'scoped memory for tpu_custom_call.1']
    #allocation7 [shape = 'u8[32768]{0}', space=vmem, size = 0x8000, scoped, tag = 'input window, operand 2, single buffered']
    #allocation8 [shape = 'u8[32768]{0}', space=vmem, size = 0x8000, scoped, tag = 'input window, operand 3, single buffered']
    #allocation9 [shape = 's32[1]{0}', space=sflag, size = 0x4, scoped, tag = 'scoped memory for tpu_custom_call.1']
    #allocation10 [shape = 'u8[8192]{0}', space=vmem, size = 0x2000, scoped, tag = 'output window, operand 0, single buffered']
    %12 = vsyncpa [#allocation3], 0
    %13 = vsyncpa [#allocation6], 0
    %14 = vsyncpa [#allocation9], 0
    %15 = vsyncpa [#allocation4], 0
    // Predicated region
    $region2: #{tpu_custom_call.1} parent=1 // pred_check
      _
    $region3: #{tpu_custom_call.1} parent=1 // pred_check_branch
      %17 = sbr.rel (0) target = $region5
    $region4: #{tpu_custom_call.1} parent=1 // pred_region
      %s19 = ssub.s32 128, 128
      %20 = vsyncadd [#allocation3], %s19
      %s21 = sshll.u32 [#allocation2], 4
      %s22 = int_to_ptr.vmem [resolvable:$true] %s21
      %27 = dma.hbm_to_vmem [thread:$0]  %s0, 128, %s22, [#allocation3], 64, 64, 4
    $region5: #{tpu_custom_call.1} parent=1 // pred_fallthru
      _
    // Predicated region
    $region6: #{tpu_custom_call.1} parent=1 // pred_check
      _
    $region7: #{tpu_custom_call.1} parent=1 // pred_check_branch
      %29 = sbr.rel (0) target = $region9
    $region8: #{tpu_custom_call.1} parent=1 // pred_region
      %s31 = ssub.s32 256, 256
      %32 = vsyncadd [#allocation6], %s31
      %s33 = sshll.u32 [#allocation5], 4
      %s34 = int_to_ptr.vmem [resolvable:$true] %s33
      %39 = dma.hbm_to_vmem [thread:$0]  %s1, 256, %s34, [#allocation6], 64, 64, 4
    $region9: #{tpu_custom_call.1} parent=1 // pred_fallthru
      _
    // Predicated region
    $region10: #{tpu_custom_call.1} parent=1 // pred_check
      _
    $region11: #{tpu_custom_call.1} parent=1 // pred_check_branch
      %41 = sbr.rel (0) target = $region13
    $region12: #{tpu_custom_call.1} parent=1 // pred_region
      %s43 = ssub.s32 1024, 1024
      %44 = vsyncadd [#allocation6], %s43
      %s45 = sshll.u32 [#allocation7], 4
      %s46 = int_to_ptr.vmem [resolvable:$true] %s45
      %51 = dma.hbm_to_vmem [thread:$0]  %s2, 1024, %s46, [#allocation6], 64, 64, 4
    $region13: #{tpu_custom_call.1} parent=1 // pred_fallthru
      _
    // Predicated region
    $region14: #{tpu_custom_call.1} parent=1 // pred_check
      _
    $region15: #{tpu_custom_call.1} parent=1 // pred_check_branch
      %53 = sbr.rel (0) target = $region17
    $region16: #{tpu_custom_call.1} parent=1 // pred_region
      %s55 = ssub.s32 1024, 1024
      %56 = vsyncadd [#allocation9], %s55
      %s57 = sshll.u32 [#allocation8], 4
      %s58 = int_to_ptr.vmem [resolvable:$true] %s57
      %63 = dma.hbm_to_vmem [thread:$0]  %s3, 1024, %s58, [#allocation9], 64, 64, 4
    $region17: #{tpu_custom_call.1} parent=1 // pred_fallthru
      _
    // Predicated region
    $region18: #{tpu_custom_call.1} parent=1 // pred_check
      _
    $region19: #{tpu_custom_call.1} parent=1 // pred_check_branch
      %65 = sbr.rel (0) target = $region21
    $region20: #{tpu_custom_call.1} parent=1 // pred_region
      _
    $region21: #{tpu_custom_call.1} parent=1 // pred_fallthru
      _
    // Predicated region
    $region22: #{tpu_custom_call.1} parent=1 // pred_check
      _
    $region23: #{tpu_custom_call.1} parent=1 // pred_check_branch
      %67 = sbr.rel (0) target = $region25
    $region24: #{tpu_custom_call.1} parent=1 // pred_region
      _
    $region25: #{tpu_custom_call.1} parent=1 // pred_fallthru
      _
    // Predicated region
    $region26: #{tpu_custom_call.1} parent=1 // pred_check
      _
    $region27: #{tpu_custom_call.1} parent=1 // pred_check_branch
      %69 = sbr.rel (0) target = $region29
    $region28: #{tpu_custom_call.1} parent=1 // pred_region
      _
    $region29: #{tpu_custom_call.1} parent=1 // pred_fallthru
      _
    // Predicated region
    $region30: #{tpu_custom_call.1} parent=1 // pred_check
      _
    $region31: #{tpu_custom_call.1} parent=1 // pred_check_branch
      %71 = sbr.rel (0) target = $region33
    $region32: #{tpu_custom_call.1} parent=1 // pred_region
      %72 = dma.done [#allocation3], 128
    $region33: #{tpu_custom_call.1} parent=1 // pred_fallthru
      _
    // Predicated region
    $region34: #{tpu_custom_call.1} parent=1 // pred_check
      _
    $region35: #{tpu_custom_call.1} parent=1 // pred_check_branch
      %74 = sbr.rel (0) target = $region37
    $region36: #{tpu_custom_call.1} parent=1 // pred_region
      %75 = dma.done [#allocation6], 256
    $region37: #{tpu_custom_call.1} parent=1 // pred_fallthru
      _
    // Predicated region
    $region38: #{tpu_custom_call.1} parent=1 // pred_check
      _
    $region39: #{tpu_custom_call.1} parent=1 // pred_check_branch
      %77 = sbr.rel (0) target = $region41
    $region40: #{tpu_custom_call.1} parent=1 // pred_region
      %78 = dma.done [#allocation6], 1024
    $region41: #{tpu_custom_call.1} parent=1 // pred_fallthru
      _
    // Predicated region
    $region42: #{tpu_custom_call.1} parent=1 // pred_check
      _
    $region43: #{tpu_custom_call.1} parent=1 // pred_check_branch
      %80 = sbr.rel (0) target = $region45
    $region44: #{tpu_custom_call.1} parent=1 // pred_region
      %81 = dma.done [#allocation9], 1024
    $region45: #{tpu_custom_call.1} parent=1 // pred_fallthru
      _
    %v83 = vld [vmem:[#allocation2] sm:$0xf]
    %v84 = vld [vmem:[#allocation2 + $0x4] sm:$0xf]
    %v85 = vld [vmem:[#allocation5] sm:$0xf]
    %v86 = vld [vmem:[#allocation5 + $0x4] sm:$0xf]
    %v87 = vld [vmem:[#allocation5 + $0x8] sm:$0xf]
    %v88 = vld [vmem:[#allocation5 + $0xc] sm:$0xf]
    %v89 = vld [vmem:[%s4] sm:$0x1]
    %v91 = vlaneseq
    %v92 = vshrl.u32 %v91, 7
    %v93 = vsub.s32 0, %v92
    %v94 = vrot.slane %v89, %v93
    %v98 = vunpack.c.l.b16 %v83
    %v99 = vunpack.c.l.b16 %v84
    %v100 = vpack.c.b16 %v99, %v98
    %v105 = vunpack.c.l.b16 %v85
    %v106 = vunpack.c.l.b16 %v86
    %v107 = vunpack.c.l.b16 %v87
    %v108 = vunpack.c.l.b16 %v88
    %v109 = vpack.c.b16 %v106, %v105
    %v110 = vpack.c.b16 %v108, %v107
    %vm113 = vcmask 261120
    %v115 = vsel %vm113, %v100, 0
    %117 = vmatprep.subr.bf16.mxu0 0
    %118 = vmatpush1.bf16.msra.mxu0 %v109
    %119 = vmatprep.subr.bf16.mxu0 0
    %120 = vmatpush1.bf16.msra.mxu0 %v110
    %121 = vmatprep.subr.bf16.mxu0 0
    %122 = vmatpush1.bf16.msra.mxu0 0
    %123 = vmatprep.subr.bf16.mxu0 0
    %124 = vmatpush1.bf16.msra.mxu0 0
    %125 = vmatprep.subr.bf16.mxu0 0
    %126 = vmatpush1.bf16.msra.mxu0 0
    %127 = vmatprep.subr.bf16.mxu0 0
    %128 = vmatpush1.bf16.msra.mxu0 0
    %129 = vmatprep.subr.bf16.mxu0 0
    %130 = vmatpush1.bf16.msra.mxu0 0
    %131 = vmatprep.subr.bf16.mxu0 0
    %132 = vmatpush1.bf16.msra.mxu0 0
    %133 = vmatprep.subr.bf16.mxu0 0
    %134 = vmatpush1.bf16.msra.mxu0 0
    %135 = vmatprep.subr.bf16.mxu0 0
    %136 = vmatpush1.bf16.msra.mxu0 0
    %137 = vmatprep.subr.bf16.mxu0 0
    %138 = vmatpush1.bf16.msra.mxu0 0
    %139 = vmatprep.subr.bf16.mxu0 0
    %140 = vmatpush1.bf16.msra.mxu0 0
    %141 = vmatprep.subr.bf16.mxu0 0
    %142 = vmatpush1.bf16.msra.mxu0 0
    %143 = vmatprep.subr.bf16.mxu0 0
    %144 = vmatpush1.bf16.msra.mxu0 0
    %145 = vmatprep.subr.bf16.mxu0 0
    %146 = vmatpush1.bf16.msra.mxu0 0
    %147 = vmatprep.subr.bf16.mxu0 0
    %148 = vmatpush1.bf16.msra.mxu0 0
    %149 = vmatprep.mubr.bf16.mxu0 0
    %150 = vmatmul.mubr.bf16.gmra.mrb[0].mxu0 %v115
    %v151 = vpop.f32.mrb[0].mxu0
    %v152 = vadd.f32 %v94, %v151
    %v153 = vpop.f32.mrb[0].mxu0
    %v154 = vpop.f32.mrb[0].mxu0
    %v155 = vadd.f32 %v94, %v154
    %v156 = vpop.f32.mrb[0].mxu0
    %157 = vdwg.mxu0
    %v158 = vxor.u32 %v152, 2147483648
    %v159 = vxor.u32 %v155, 2147483648
    %v160 = vmul.f32 %v158, 1.442695
    %v161 = vpow.pop %v160
    %v162 = vmul.f32 %v159, 1.442695
    %v163 = vpow.pop %v162
    %v164 = vadd.f32 %v161, 1.0
    %v165 = vadd.f32 %v163, 1.0
    %v166 = vrcp.pop %v164
    %v167 = vmul.f32 1.0, %v166
    %v168 = vrcp.pop %v165
    %v169 = vmul.f32 1.0, %v168
    %v170 = vpack.c.bf16 %v169, %v167
    %v171 = vld [vmem:[#allocation7] sm:$0xf]
    %v172 = vld [vmem:[#allocation7 + $0x4] sm:$0xf]
    %v173 = vld [vmem:[#allocation7 + $0x8] sm:$0xf]
    %v174 = vld [vmem:[#allocation7 + $0xc] sm:$0xf]
    %v175 = vld [vmem:[#allocation7 + $0x10] sm:$0xf]
    %v176 = vld [vmem:[#allocation7 + $0x14] sm:$0xf]
    %v177 = vld [vmem:[#allocation7 + $0x18] sm:$0xf]
    %v178 = vld [vmem:[#allocation7 + $0x1c] sm:$0xf]
    %v179 = vld [vmem:[#allocation7 + $0x20] sm:$0xf]
    %v180 = vld [vmem:[#allocation7 + $0x24] sm:$0xf]
    %v181 = vld [vmem:[#allocation7 + $0x28] sm:$0xf]
    %v182 = vld [vmem:[#allocation7 + $0x2c] sm:$0xf]
    %v183 = vld [vmem:[#allocation7 + $0x30] sm:$0xf]
    %v184 = vld [vmem:[#allocation7 + $0x34] sm:$0xf]
    %v185 = vld [vmem:[#allocation7 + $0x38] sm:$0xf]
    %v186 = vld [vmem:[#allocation7 + $0x3c] sm:$0xf]
    %v187 = vld [vmem:[%s5] sm:$0x1]
    %v189 = vlaneseq
    %v190 = vshrl.u32 %v189, 7
    %v191 = vsub.s32 0, %v190
    %v192 = vrot.slane %v187, %v191
    %v210 = vunpack.c.l.b16 %v171
    %v211 = vunpack.c.l.b16 %v172
    %v212 = vunpack.c.l.b16 %v173
    %v213 = vunpack.c.l.b16 %v174
    %v214 = vunpack.c.l.b16 %v175
    %v215 = vunpack.c.l.b16 %v176
    %v216 = vunpack.c.l.b16 %v177
    %v217 = vunpack.c.l.b16 %v178
    %v218 = vunpack.c.l.b16 %v179
    %v219 = vunpack.c.l.b16 %v180
    %v220 = vunpack.c.l.b16 %v181
    %v221 = vunpack.c.l.b16 %v182
    %v222 = vunpack.c.l.b16 %v183
    %v223 = vunpack.c.l.b16 %v184
    %v224 = vunpack.c.l.b16 %v185
    %v225 = vunpack.c.l.b16 %v186
    %v226 = vpack.c.b16 %v211, %v210
    %v227 = vpack.c.b16 %v213, %v212
    %v228 = vpack.c.b16 %v215, %v214
    %v229 = vpack.c.b16 %v217, %v216
    %v230 = vpack.c.b16 %v219, %v218
    %v231 = vpack.c.b16 %v221, %v220
    %v232 = vpack.c.b16 %v223, %v222
    %v233 = vpack.c.b16 %v225, %v224
    %242 = vmatprep.subr.bf16.mxu0 0
    %243 = vmatpush1.bf16.msra.mxu0 %v226
    %244 = vmatprep.subr.bf16.mxu0 0
    %245 = vmatpush1.bf16.msra.mxu0 %v227
    %246 = vmatprep.subr.bf16.mxu0 0
    %247 = vmatpush1.bf16.msra.mxu0 %v228
    %248 = vmatprep.subr.bf16.mxu0 0
    %249 = vmatpush1.bf16.msra.mxu0 %v229
    %250 = vmatprep.subr.bf16.mxu0 0
    %251 = vmatpush1.bf16.msra.mxu0 %v230
    %252 = vmatprep.subr.bf16.mxu0 0
    %253 = vmatpush1.bf16.msra.mxu0 %v231
    %254 = vmatprep.subr.bf16.mxu0 0
    %255 = vmatpush1.bf16.msra.mxu0 %v232
    %256 = vmatprep.subr.bf16.mxu0 0
    %257 = vmatpush1.bf16.msra.mxu0 %v233
    %258 = vmatprep.subr.bf16.mxu0 0
    %259 = vmatpush1.bf16.msra.mxu0 0
    %260 = vmatprep.subr.bf16.mxu0 0
    %261 = vmatpush1.bf16.msra.mxu0 0
    %262 = vmatprep.subr.bf16.mxu0 0
    %263 = vmatpush1.bf16.msra.mxu0 0
    %264 = vmatprep.subr.bf16.mxu0 0
    %265 = vmatpush1.bf16.msra.mxu0 0
    %266 = vmatprep.subr.bf16.mxu0 0
    %267 = vmatpush1.bf16.msra.mxu0 0
    %268 = vmatprep.subr.bf16.mxu0 0
    %269 = vmatpush1.bf16.msra.mxu0 0
    %270 = vmatprep.subr.bf16.mxu0 0
    %271 = vmatpush1.bf16.msra.mxu0 0
    %272 = vmatprep.subr.bf16.mxu0 0
    %273 = vmatpush1.bf16.msra.mxu0 0
    %274 = vmatprep.mubr.bf16.mxu0 0
    %275 = vmatmul.mubr.bf16.gmra.mrb[0].mxu0 %v170
    %v276 = vpop.f32.mrb[0].mxu0
    %v277 = vadd.f32 %v192, %v276
    %v278 = vpop.f32.mrb[0].mxu0
    %v279 = vpop.f32.mrb[0].mxu0
    %v280 = vadd.f32 %v192, %v279
    %v281 = vpop.f32.mrb[0].mxu0
    %282 = vdwg.mxu0
    %v283 = vxor.u32 %v277, 2147483648
    %v284 = vxor.u32 %v280, 2147483648
    %v285 = vmul.f32 %v283, 1.442695
    %v286 = vpow.pop %v285
    %v287 = vmul.f32 %v284, 1.442695
    %v288 = vpow.pop %v287
    %v289 = vadd.f32 %v286, 1.0
    %v290 = vadd.f32 %v288, 1.0
    %v291 = vrcp.pop %v289
    %v292 = vmul.f32 1.0, %v291
    %v293 = vrcp.pop %v290
    %v294 = vmul.f32 1.0, %v293
    %v295 = vpack.c.bf16 %v294, %v292
    %v296 = vld [vmem:[#allocation8] sm:$0xf]
    %v297 = vld [vmem:[#allocation8 + $0x4] sm:$0xf]
    %v298 = vld [vmem:[#allocation8 + $0x8] sm:$0xf]
    %v299 = vld [vmem:[#allocation8 + $0xc] sm:$0xf]
    %v300 = vld [vmem:[#allocation8 + $0x10] sm:$0xf]
    %v301 = vld [vmem:[#allocation8 + $0x14] sm:$0xf]
    %v302 = vld [vmem:[#allocation8 + $0x18] sm:$0xf]
    %v303 = vld [vmem:[#allocation8 + $0x1c] sm:$0xf]
    %v304 = vld [vmem:[#allocation8 + $0x20] sm:$0xf]
    %v305 = vld [vmem:[#allocation8 + $0x24] sm:$0xf]
    %v306 = vld [vmem:[#allocation8 + $0x28] sm:$0xf]
    %v307 = vld [vmem:[#allocation8 + $0x2c] sm:$0xf]
    %v308 = vld [vmem:[#allocation8 + $0x30] sm:$0xf]
    %v309 = vld [vmem:[#allocation8 + $0x34] sm:$0xf]
    %v310 = vld [vmem:[#allocation8 + $0x38] sm:$0xf]
    %v311 = vld [vmem:[#allocation8 + $0x3c] sm:$0xf]
    %v312 = vld [vmem:[%s6] sm:$0x1]
    %v314 = vlaneseq
    %v315 = vshrl.u32 %v314, 7
    %v316 = vsub.s32 0, %v315
    %v317 = vrot.slane %v312, %v316
    %v335 = vunpack.c.l.b16 %v296
    %v336 = vunpack.c.l.b16 %v297
    %v337 = vunpack.c.l.b16 %v298
    %v338 = vunpack.c.l.b16 %v299
    %v339 = vunpack.c.l.b16 %v300
    %v340 = vunpack.c.l.b16 %v301
    %v341 = vunpack.c.l.b16 %v302
    %v342 = vunpack.c.l.b16 %v303
    %v343 = vunpack.c.l.b16 %v304
    %v344 = vunpack.c.l.b16 %v305
    %v345 = vunpack.c.l.b16 %v306
    %v346 = vunpack.c.l.b16 %v307
    %v347 = vunpack.c.l.b16 %v308
    %v348 = vunpack.c.l.b16 %v309
    %v349 = vunpack.c.l.b16 %v310
    %v350 = vunpack.c.l.b16 %v311
    %v351 = vpack.c.b16 %v336, %v335
    %v352 = vpack.c.b16 %v338, %v337
    %v353 = vpack.c.b16 %v340, %v339
    %v354 = vpack.c.b16 %v342, %v341
    %v355 = vpack.c.b16 %v344, %v343
    %v356 = vpack.c.b16 %v346, %v345
    %v357 = vpack.c.b16 %v348, %v347
    %v358 = vpack.c.b16 %v350, %v349
    %367 = vmatprep.subr.bf16.mxu0 0
    %368 = vmatpush1.bf16.msra.mxu0 %v351
    %369 = vmatprep.subr.bf16.mxu0 0
    %370 = vmatpush1.bf16.msra.mxu0 %v352
    %371 = vmatprep.subr.bf16.mxu0 0
    %372 = vmatpush1.bf16.msra.mxu0 %v353
    %373 = vmatprep.subr.bf16.mxu0 0
    %374 = vmatpush1.bf16.msra.mxu0 %v354
    %375 = vmatprep.subr.bf16.mxu0 0
    %376 = vmatpush1.bf16.msra.mxu0 %v355
    %377 = vmatprep.subr.bf16.mxu0 0
    %378 = vmatpush1.bf16.msra.mxu0 %v356
    %379 = vmatprep.subr.bf16.mxu0 0
    %380 = vmatpush1.bf16.msra.mxu0 %v357
    %381 = vmatprep.subr.bf16.mxu0 0
    %382 = vmatpush1.bf16.msra.mxu0 %v358
    %383 = vmatprep.subr.bf16.mxu0 0
    %384 = vmatpush1.bf16.msra.mxu0 0
    %385 = vmatprep.subr.bf16.mxu0 0
    %386 = vmatpush1.bf16.msra.mxu0 0
    %387 = vmatprep.subr.bf16.mxu0 0
    %388 = vmatpush1.bf16.msra.mxu0 0
    %389 = vmatprep.subr.bf16.mxu0 0
    %390 = vmatpush1.bf16.msra.mxu0 0
    %391 = vmatprep.subr.bf16.mxu0 0
    %392 = vmatpush1.bf16.msra.mxu0 0
    %393 = vmatprep.subr.bf16.mxu0 0
    %394 = vmatpush1.bf16.msra.mxu0 0
    %395 = vmatprep.subr.bf16.mxu0 0
    %396 = vmatpush1.bf16.msra.mxu0 0
    %397 = vmatprep.subr.bf16.mxu0 0
    %398 = vmatpush1.bf16.msra.mxu0 0
    %399 = vmatprep.mubr.bf16.mxu0 0
    %400 = vmatmul.mubr.bf16.gmra.mrb[0].mxu0 %v295
    %v401 = vpop.f32.mrb[0].mxu0
    %v402 = vadd.f32 %v317, %v401
    %v403 = vpop.f32.mrb[0].mxu0
    %v404 = vpop.f32.mrb[0].mxu0
    %v405 = vadd.f32 %v317, %v404
    %v406 = vpop.f32.mrb[0].mxu0
    %407 = vdwg.mxu0
    %408 = vmax.xlane.f32.xlu0 %v402
    %v409 = vpop.xlane.xlu0 %408
    %410 = vmax.xlane.f32.xlu0 %v405
    %v411 = vpop.xlane.xlu0 %410
    %v412 = vsub.f32 %v402, %v409
    %v413 = vsub.f32 %v405, %v411
    %v414 = vmul.f32 %v412, 1.442695
    %v415 = vpow.pop %v414
    %v416 = vmul.f32 %v413, 1.442695
    %v417 = vpow.pop %v416
    %418 = vadd.xlane.f32.xlu0 %v415
    %v419 = vpop.xlane.xlu0 %418
    %420 = vadd.xlane.f32.xlu0 %v417
    %v421 = vpop.xlane.xlu0 %420
    %v422 = vrcp.pop %v419
    %v423 = vmul.f32 1.0, %v422
    %v424 = vrcp.pop %v421
    %v425 = vmul.f32 1.0, %v424
    %v426 = vmul.f32 %v415, %v423
    %v427 = vmul.f32 %v417, %v425
    %428 = vst [vmem:[#allocation10] sm:$0xff] %v426
    %429 = vst [vmem:[#allocation10 + $0x8] sm:$0xff] %v427
    // Predicated region
    $region46: #{tpu_custom_call.1} parent=1 // pred_check
      _
    $region47: #{tpu_custom_call.1} parent=1 // pred_check_branch
      %431 = sbr.rel (0) target = $region49
    $region48: #{tpu_custom_call.1} parent=1 // pred_region
      %s433 = ssub.s32 256, 256
      %434 = vsyncadd [#allocation4], %s433
      %s435 = sshll.u32 [#allocation10], 4
      %s436 = int_to_ptr.vmem [resolvable:$true] %s435
      %441 = dma.vmem_to_hbm [thread:$0]  %s436, 256, %s7, [#allocation4], 128, 128, 8
    $region49: #{tpu_custom_call.1} parent=1 // pred_fallthru
      _
    // Predicated region
    $region50: #{tpu_custom_call.1} parent=1 // pred_check
      _
    $region51: #{tpu_custom_call.1} parent=1 // pred_check_branch
      %443 = sbr.rel (0) target = $region53
    $region52: #{tpu_custom_call.1} parent=1 // pred_region
      %444 = dma.done [#allocation4], 256
    $region53: #{tpu_custom_call.1} parent=1 // pred_fallthru
      _
    %445 = vsyncpa [#allocation3], 1
    %446 = vsyncpa [#allocation6], 1
    %447 = vsyncpa [#allocation9], 1
    %448 = vsyncpa [#allocation4], 1

</llo_original>
